<compile_context>
chip_gen: v7x
topology: tpu7x:2x2x1
jax: 0.10.0
libtpu: 0.0.40
codegen_flags: <defaults>
</compile_context>

<pallas_src>
import itertools
import math
from functools import partial

import jax
import jax.numpy as jnp
from jax import lax
from jax.experimental import pallas as pl
from jax.experimental.pallas import tpu as pltpu

_LANE = 128        # TPU lane width
_UNROLL_MAX = 64   # statically unrolled replica stores up to this many


def _sublane(dtype) -> int:
    """Second-to-last-dim packing multiple (f32: 8, bf16: 16, int8: 32)."""
    return max(8, 32 // jnp.dtype(dtype).itemsize)


def _vmem_capacity_bytes() -> int:
    try:
        info = pltpu.get_tpu_info()
        cap = int(getattr(info, "vmem_capacity_bytes", 0) or 0)
        if cap > 0:
            return cap
    except Exception:
        pass
    return 128 << 20  # v5e/v6e default


def _group(shape, reps):
    """Collapse each [replicated dim][following rep==1 dims] run into one canonical dim."""
    sizes, creps = [], []
    for s, r in zip(shape, reps):
        if r == 1 and sizes:
            sizes[-1] *= int(s)
        else:
            sizes.append(int(s))
            creps.append(int(r))
    while len(sizes) < 2:
        sizes.insert(0, 1)
        creps.insert(0, 1)
    return sizes, creps


def _largest_divisor_at_most(n: int, m: int) -> int:
    m = min(n, max(1, m))
    best, i = 1, 1
    while i * i <= n:
        if n % i == 0:
            for d in (i, n // i):
                if best < d <= m:
                    best = d
        i += 1
    return best


class _Dim:
    __slots__ = ("in_block", "out_block", "k_rep", "nchunks",
                 "chunk_extent", "rep_extent", "chunk_pos", "rep_pos")

    def __init__(self):
        self.in_block = 1      # input block extent along this dim
        self.out_block = 1     # output block extent along this dim
        self.k_rep = 1         # replication fused into the kernel body
        self.nchunks = 1       # number of source blocks along this dim
        self.chunk_extent = None   # grid extent for the source/chunk axis
        self.rep_extent = None     # grid extent for the replica axis
        self.chunk_pos = None      # grid axis index (chunk)
        self.rep_pos = None        # grid axis index (replica)


def _plan_tail(size, rep, align, budget):
    """Plan one of the last two canonical dims (alignment-constrained)."""
    p = _Dim()
    if rep == 1:
        if size <= budget:
            p.in_block = p.out_block = size                    # full dim -> legal
        else:
            blk = max(align, (budget // align) * align)        # aligned chunk
            p.in_block = p.out_block = blk
            p.nchunks = pl.cdiv(size, blk)
            p.chunk_extent = p.nchunks
        return p
    # rep > 1
    if size * rep <= budget:
        # Fuse replication into the kernel: blocks span full input/output dims,
        # legal regardless of alignment; fewer grid steps, bigger writebacks.
        p.in_block = size
        p.out_block = size * rep
        p.k_rep = rep
        return p
    # Caller guarantees alignment here (pads otherwise).
    assert size % align == 0, (size, align)
    if size <= budget:
        p.in_block = p.out_block = size                        # whole dim, rep on grid
        p.rep_extent = rep
        return p
    d = _largest_divisor_at_most(size // align, max(1, budget // align))
    blk = align * d
    p.in_block = p.out_block = blk
    p.nchunks = size // blk
    p.chunk_extent = p.nchunks
    p.rep_extent = rep
    return p


def _plan_leading(size, rep, budget, can_fold):
    """Leading canonical dims: fold as much as the budget allows (no alignment rule)."""
    p = _Dim()
    if can_fold and size * rep <= budget:
        p.in_block, p.out_block, p.k_rep = size, size * rep, rep
        return p, max(1, budget // (size * rep)), True
    if can_fold and size <= budget:
        p.in_block = p.out_block = size
        if rep > 1:
            p.rep_extent = rep
        return p, max(1, budget // size), True
    if rep == 1:
        blk = max(1, min(size, budget)) if can_fold else 1
        p.in_block = p.out_block = blk
        p.nchunks = pl.cdiv(size, blk)
        if p.nchunks > 1:
            p.chunk_extent = p.nchunks
        return p, 1, False
    blk = _largest_divisor_at_most(size, budget) if can_fold else 1
    p.in_block = p.out_block = blk
    p.nchunks = size // blk
    if p.nchunks > 1:
        p.chunk_extent = p.nchunks
    p.rep_extent = rep
    return p, 1, False


def _kernel_body(x_ref, o_ref, *, in_block, k_reps, sub):
    g = len(in_block)
    rep_dims = [d for d in range(g) if k_reps[d] > 1]
    if not rep_dims:
        o_ref[...] = x_ref[...]
        return

    total = 1
    for d in rep_dims:
        total *= k_reps[d]

    if total <= _UNROLL_MAX:
        # Small replica count: statically unrolled stores with static slices.
        for combo in itertools.product(*[range(k_reps[d]) for d in rep_dims]):
            idx = [slice(None)] * g
            for d, r in zip(rep_dims, combo):
                idx[d] = slice(r * in_block[d], (r + 1) * in_block[d])
            o_ref[tuple(idx)] = x_ref[...]
        return

    # Large replica count: stream stores through fori_loop (bounded live ranges,
    # no jnp.tile materialization of the full replicated block).
    def body(i, carry):
        rem = i
        idx = [slice(None)] * g
        for d in reversed(rep_dims):
            k = k_reps[d]
            r = rem % k
            rem = rem // k
            start = r * in_block[d]
            if d == g - 1 and in_block[d] % _LANE == 0:
                start = pl.multiple_of(start, _LANE)
            elif d == g - 2 and in_block[d] % sub == 0:
                start = pl.multiple_of(start, sub)
            idx[d] = pl.ds(start, in_block[d])
        o_ref[tuple(idx)] = x_ref[...]
        return carry

    lax.fori_loop(0, total, body, 0)


def tile_pallas(x, reps, match_shape_exactly: bool = True, block_bytes: int = None):
    """np.tile / torch.Tensor.repeat for a jnp array; the copy runs in Pallas."""
    x = jnp.asarray(x)
    assert not match_shape_exactly or x.ndim == len(reps), (x.shape, reps)

    reps = [int(r) for r in reps]
    # torch.Tensor.repeat normalization (and np.tile for short reps).
    for _ in range(max(0, x.ndim - len(reps))):
        reps.insert(0, 1)
    for _ in range(max(0, len(reps) - x.ndim)):
        x = x[None]

    out_shape = tuple(int(s) * int(r) for s, r in zip(x.shape, reps))

    # Degenerate cases handled without a kernel.
    if any(r == 0 for r in reps) or x.size == 0:
        return jnp.zeros(out_shape, x.dtype)
    if all(r == 1 for r in reps):
        return x

    sizes, creps = _group(x.shape, reps)
    g = len(sizes)
    dtype = x.dtype
    itemsize = jnp.dtype(dtype).itemsize
    sub = _sublane(dtype)

    x_c = x.reshape(sizes)  # wrapper-side layout plumbing (row-major compatible)

    # Generation-aware output-block budget: ~VMEM/16 (8 MiB on 128 MiB chips,
    # 4 MiB on 64 MiB v7x), clamped; overridable for testing/tuning.
    vmem_cap = _vmem_capacity_bytes()
    if block_bytes is None:
        target_bytes = int(min(8 << 20, max(2 << 20, vmem_cap // 16)))
    else:
        target_bytes = int(block_bytes)
    max_out_elems = max(_LANE, target_bytes // itemsize)

    pads = []  # (canonical dim, rep, orig size, padded size)

    # --- lane (last) dim: reserve a sublane factor so the row dim never
    # inflates the block past the budget -------------------------------------
    row_total = sizes[-2] * creps[-2]
    reserve = max(1, min(sub, row_total))
    lane_budget = max(_LANE, max_out_elems // reserve)

    if (creps[-1] > 1 and sizes[-1] % _LANE != 0
            and sizes[-1] * creps[-1] > lane_budget):
        # Large unaligned replicated lane dim: pad to 128 and take the aligned
        # path; the pad is sliced off after the kernel.
        s, sp = sizes[-1], pl.cdiv(sizes[-1], _LANE) * _LANE
        x_c = jnp.pad(x_c, [(0, 0)] * (g - 1) + [(0, sp - s)])
        pads.append((g - 1, creps[-1], s, sp))
        sizes[-1] = sp

    plans = [None] * g
    plans[-1] = _plan_tail(sizes[-1], creps[-1], _LANE, lane_budget)

    # --- row (second-to-last) dim --------------------------------------------
    row_budget = max(1, max_out_elems // plans[-1].out_block)
    if (creps[-2] > 1 and sizes[-2] % sub != 0
            and sizes[-2] * creps[-2] > row_budget):
        s, sp = sizes[-2], pl.cdiv(sizes[-2], sub) * sub
        x_c = jnp.pad(x_c, [(0, 0)] * (g - 2) + [(0, sp - s), (0, 0)])
        pads.append((g - 2, creps[-2], s, sp))
        sizes[-2] = sp
    plans[-2] = _plan_tail(sizes[-2], creps[-2], sub, row_budget)

    # --- leading dims: fold into the block while the budget lasts ------------
    rem = max(1, max_out_elems // (plans[-1].out_block * plans[-2].out_block))
    can_fold = True
    for d in range(g - 3, -1, -1):
        plans[d], rem, can_fold = _plan_leading(sizes[d], creps[d], rem, can_fold)

    # --- grid assembly: chunk axes outer ("parallel"), replica axes inner
    # ("arbitrary") so the unchanged input-block DMA is reused across replicas
    # and megacore sharding lands on chunk axes, not replicas ------------------
    grid = []

    def _axis(extent):
        grid.append(int(extent))
        return len(grid) - 1

    for d in range(g):
        if plans[d].chunk_extent is not None:
            plans[d].chunk_pos = _axis(plans[d].chunk_extent)
    n_chunk_axes = len(grid)
    for d in range(g):
        if plans[d].rep_extent is not None:
            plans[d].rep_pos = _axis(plans[d].rep_extent)
    n_rep_axes = len(grid) - n_chunk_axes

    if not grid:
        grid = [1]
        semantics = ("arbitrary",)
    else:
        semantics = ("parallel",) * n_chunk_axes + ("arbitrary",) * n_rep_axes
    grid = tuple(grid)

    def in_index_map(*gi):
        return tuple(gi[p.chunk_pos] if p.chunk_pos is not None else 0
                     for p in plans)

    def out_index_map(*gi):
        idx = []
        for p in plans:
            c = gi[p.chunk_pos] if p.chunk_pos is not None else 0
            r = gi[p.rep_pos] if p.rep_pos is not None else 0
            idx.append(r * p.nchunks + c)
        return tuple(idx)

    in_block = tuple(p.in_block for p in plans)
    out_block = tuple(p.out_block for p in plans)
    out_canon = tuple(s * r for s, r in zip(sizes, creps))

    kernel = partial(_kernel_body,
                     in_block=in_block,
                     k_reps=tuple(p.k_rep for p in plans),
                     sub=sub)

    in_bytes = math.prod(in_block) * itemsize
    out_bytes = math.prod(out_block) * itemsize
    needed = 2 * (in_bytes + out_bytes) + (4 << 20)          # double-buffered + slack
    vmem_ceiling = max(32 << 20, min(100 << 20, (vmem_cap * 3) // 4))
    vmem_limit = int(min(max(needed, 32 << 20), vmem_ceiling))

    out_nbytes = math.prod(out_canon) * itemsize
    cost = pl.CostEstimate(flops=0, transcendentals=0,
                           bytes_accessed=int(x_c.size * itemsize + out_nbytes))

    out_c = pl.pallas_call(
        kernel,
        out_shape=jax.ShapeDtypeStruct(out_canon, dtype),
        grid=grid,
        in_specs=[pl.BlockSpec(in_block, in_index_map)],
        out_specs=pl.BlockSpec(out_block, out_index_map),
        compiler_params=pltpu.CompilerParams(
            dimension_semantics=semantics,
            vmem_limit_bytes=vmem_limit,
        ),
        cost_estimate=cost,
    )(x_c)

    # Undo wrapper-side alignment padding of replicated tail dims.
    for dim, r, s, sp in pads:
        shp = out_c.shape
        out_c = out_c.reshape(shp[:dim] + (r, sp) + shp[dim + 1:])
        sel = (slice(None),) * (dim + 1) + (slice(0, s),)
        out_c = out_c[sel].reshape(shp[:dim] + (r * s,) + shp[dim + 1:])

    # Row-major compatible reshape back to the true tiled output shape.
    return out_c.reshape(out_shape)


if __name__ == "__main__":
    key = jax.random.PRNGKey(0)

    def _check(x, reps, **kw):
        out = jax.block_until_ready(tile_pallas(x, reps, **kw))
        ref = jnp.tile(x, reps)
        assert out.shape == ref.shape, (out.shape, ref.shape)
        assert out.dtype == ref.dtype, (out.dtype, ref.dtype)
        assert bool(jnp.array_equal(out, ref)), ("Pallas tile mismatch", x.shape, reps, kw)

    # Main demo: NCHW input, match_shape_exactly=True (len(reps) == ndim).
    x = jax.random.normal(key, (2, 4, 16, 16), dtype=jnp.float32)
    _check(x, (2, 1, 2, 2))

    # Leading-axis-only replication: collapsed, lane-dense single-block path.
    _check(x, (3, 1, 1, 1))

    # Unaligned replicated last dim (fused in-kernel replication).
    _check(x[..., :10], (2, 1, 2, 3))

    # bf16 (different sublane packing).
    _check(x.astype(jnp.bfloat16), (2, 1, 2, 2))

    # Forced-tiny block: exercises chunk + grid-replica axes and dimension_semantics.
    _check(x, (2, 1, 2, 2), block_bytes=4096)

    # Forced pad path: large (relative to budget) unaligned replicated lane dim.
    x3 = jax.random.normal(key, (1, 200), dtype=jnp.float32)
    _check(x3, (1, 3), block_bytes=1024)

    print("KERNEL_OK")
</pallas_src>

<mosaic_0001>
module attributes {stable_mosaic.version = 11 : i64} {
  func.func @_kernel_body(%arg0: i32, %arg1: memref<8x16x16xf32, #tpu.memory_space<vmem>>, %arg2: memref<16x32x32xf32, #tpu.memory_space<vmem>>) attributes {dimension_semantics = [#tpu.dimension_semantics<arbitrary>], iteration_bounds = array<i64: 1>, scalar_prefetch = 0 : i64, scratch_operands = 0 : i64, tpu.core_type = #tpu.core_type<tc>, window_params = [{pipeline_mode = #tpu.pipeline_mode<synchronous>, transform_indices = @transform_0, window_bounds = array<i64: 8, 16, 16>}, {pipeline_mode = #tpu.pipeline_mode<synchronous>, transform_indices = @transform_1, window_bounds = array<i64: 16, 32, 32>}]} {
    %c0 = arith.constant 0 : index
    %c0_0 = arith.constant 0 : index
    %c0_1 = arith.constant 0 : index
    %0 = vector.load %arg1[%c0, %c0_0, %c0_1] : memref<8x16x16xf32, #tpu.memory_space<vmem>>, vector<8x16x16xf32>
    %c0_2 = arith.constant 0 : index
    %c0_3 = arith.constant 0 : index
    %c0_4 = arith.constant 0 : index
    %1 = vector.load %arg2[%c0_2, %c0_3, %c0_4] : memref<16x32x32xf32, #tpu.memory_space<vmem>>, vector<8x16x16xf32>
    tpu.vector_store %arg2[%c0_2, %c0_3, %c0_4], %0 {strides = array<i32>} : memref<16x32x32xf32, #tpu.memory_space<vmem>>, vector<8x16x16xf32>,
    %c0_5 = arith.constant 0 : index
    %c0_6 = arith.constant 0 : index
    %c0_7 = arith.constant 0 : index
    %2 = vector.load %arg1[%c0_5, %c0_6, %c0_7] : memref<8x16x16xf32, #tpu.memory_space<vmem>>, vector<8x16x16xf32>
    %c0_8 = arith.constant 0 : index
    %c0_9 = arith.constant 0 : index
    %c16 = arith.constant 16 : index
    %3 = vector.load %arg2[%c0_8, %c0_9, %c16] : memref<16x32x32xf32, #tpu.memory_space<vmem>>, vector<8x16x16xf32>
    tpu.vector_store %arg2[%c0_8, %c0_9, %c16], %2 {strides = array<i32>} : memref<16x32x32xf32, #tpu.memory_space<vmem>>, vector<8x16x16xf32>,
    %c0_10 = arith.constant 0 : index
    %c0_11 = arith.constant 0 : index
    %c0_12 = arith.constant 0 : index
    %4 = vector.load %arg1[%c0_10, %c0_11, %c0_12] : memref<8x16x16xf32, #tpu.memory_space<vmem>>, vector<8x16x16xf32>
    %c0_13 = arith.constant 0 : index
    %c16_14 = arith.constant 16 : index
    %c0_15 = arith.constant 0 : index
    %5 = vector.load %arg2[%c0_13, %c16_14, %c0_15] : memref<16x32x32xf32, #tpu.memory_space<vmem>>, vector<8x16x16xf32>
    tpu.vector_store %arg2[%c0_13, %c16_14, %c0_15], %4 {strides = array<i32>} : memref<16x32x32xf32, #tpu.memory_space<vmem>>, vector<8x16x16xf32>,
    %c0_16 = arith.constant 0 : index
    %c0_17 = arith.constant 0 : index
    %c0_18 = arith.constant 0 : index
    %6 = vector.load %arg1[%c0_16, %c0_17, %c0_18] : memref<8x16x16xf32, #tpu.memory_space<vmem>>, vector<8x16x16xf32>
    %c0_19 = arith.constant 0 : index
    %c16_20 = arith.constant 16 : index
    %c16_21 = arith.constant 16 : index
    %7 = vector.load %arg2[%c0_19, %c16_20, %c16_21] : memref<16x32x32xf32, #tpu.memory_space<vmem>>, vector<8x16x16xf32>
    tpu.vector_store %arg2[%c0_19, %c16_20, %c16_21], %6 {strides = array<i32>} : memref<16x32x32xf32, #tpu.memory_space<vmem>>, vector<8x16x16xf32>,
    %c0_22 = arith.constant 0 : index
    %c0_23 = arith.constant 0 : index
    %c0_24 = arith.constant 0 : index
    %8 = vector.load %arg1[%c0_22, %c0_23, %c0_24] : memref<8x16x16xf32, #tpu.memory_space<vmem>>, vector<8x16x16xf32>
    %c8 = arith.constant 8 : index
    %c0_25 = arith.constant 0 : index
    %c0_26 = arith.constant 0 : index
    %9 = vector.load %arg2[%c8, %c0_25, %c0_26] : memref<16x32x32xf32, #tpu.memory_space<vmem>>, vector<8x16x16xf32>
    tpu.vector_store %arg2[%c8, %c0_25, %c0_26], %8 {strides = array<i32>} : memref<16x32x32xf32, #tpu.memory_space<vmem>>, vector<8x16x16xf32>,
    %c0_27 = arith.constant 0 : index
    %c0_28 = arith.constant 0 : index
    %c0_29 = arith.constant 0 : index
    %10 = vector.load %arg1[%c0_27, %c0_28, %c0_29] : memref<8x16x16xf32, #tpu.memory_space<vmem>>, vector<8x16x16xf32>
    %c8_30 = arith.constant 8 : index
    %c0_31 = arith.constant 0 : index
    %c16_32 = arith.constant 16 : index
    %11 = vector.load %arg2[%c8_30, %c0_31, %c16_32] : memref<16x32x32xf32, #tpu.memory_space<vmem>>, vector<8x16x16xf32>
    tpu.vector_store %arg2[%c8_30, %c0_31, %c16_32], %10 {strides = array<i32>} : memref<16x32x32xf32, #tpu.memory_space<vmem>>, vector<8x16x16xf32>,
    %c0_33 = arith.constant 0 : index
    %c0_34 = arith.constant 0 : index
    %c0_35 = arith.constant 0 : index
    %12 = vector.load %arg1[%c0_33, %c0_34, %c0_35] : memref<8x16x16xf32, #tpu.memory_space<vmem>>, vector<8x16x16xf32>
    %c8_36 = arith.constant 8 : index
    %c16_37 = arith.constant 16 : index
    %c0_38 = arith.constant 0 : index
    %13 = vector.load %arg2[%c8_36, %c16_37, %c0_38] : memref<16x32x32xf32, #tpu.memory_space<vmem>>, vector<8x16x16xf32>
    tpu.vector_store %arg2[%c8_36, %c16_37, %c0_38], %12 {strides = array<i32>} : memref<16x32x32xf32, #tpu.memory_space<vmem>>, vector<8x16x16xf32>,
    %c0_39 = arith.constant 0 : index
    %c0_40 = arith.constant 0 : index
    %c0_41 = arith.constant 0 : index
    %14 = vector.load %arg1[%c0_39, %c0_40, %c0_41] : memref<8x16x16xf32, #tpu.memory_space<vmem>>, vector<8x16x16xf32>
    %c8_42 = arith.constant 8 : index
    %c16_43 = arith.constant 16 : index
    %c16_44 = arith.constant 16 : index
    %15 = vector.load %arg2[%c8_42, %c16_43, %c16_44] : memref<16x32x32xf32, #tpu.memory_space<vmem>>, vector<8x16x16xf32>
    tpu.vector_store %arg2[%c8_42, %c16_43, %c16_44], %14 {strides = array<i32>} : memref<16x32x32xf32, #tpu.memory_space<vmem>>, vector<8x16x16xf32>,
    return
  }
  func.func @transform_0(%arg0: i32) -> (i32, i32, i32) {
    %c0_i32 = arith.constant 0 : i32
    %c0_i32_0 = arith.constant 0 : i32
    %c0_i32_1 = arith.constant 0 : i32
    %c0_i32_2 = arith.constant 0 : i32
    return %c0_i32, %c0_i32_0, %c0_i32_1 : i32, i32, i32
  }
  func.func @transform_1(%arg0: i32) -> (i32, i32, i32) {
    %c0_i32 = arith.constant 0 : i32
    %c0_i32_0 = arith.constant 0 : i32
    %c0_i32_1 = arith.constant 0 : i32
    %c0_i32_2 = arith.constant 0 : i32
    return %c0_i32, %c0_i32_0, %c0_i32_1 : i32, i32, i32
  }
}

</mosaic_0001>

<llo_original>
// kernel: tpu_custom_call.1
$region0: #{tpu_custom_call.1}
  #allocation0 [shape = 'u32[]', space=smem, size = 0x4, offset = 0x4, fixed_abs, tag = 'smem constant byte address 0x4 - core index']
  #allocation1 [shape = 'u32[144,128]{1,0:T(1,128)}', space=vmem, size = 0x12000, scoped, tag = 'internal scratch']
  %s0 = inlined_call_operand.hbm [shape: f32[8,16,16], index: 0, kind: input, shape index: {}]
  %s1 = inlined_call_operand.hbm [shape: f32[16,32,32], index: 1, kind: output, shape index: {}]
  %s2 = sld [smem:[#allocation0]]
  $region18: #{tpu_custom_call.1} parent=0
    _
  %s4 = ssub.s32 1, %s2
  %s5 = scalar_select 0, %s4, %s2
  $region1: #{tpu_custom_call.1} parent=0
    #allocation2 [shape = 'u8[65536]{0}', space=vmem, size = 0x10000, scoped, tag = 'input window, operand 0, single buffered']
    #allocation3 [shape = 's32[1]{0}', space=sflag, size = 0x4, scoped, tag = 'scoped memory for tpu_custom_call.1']
    #allocation4 [shape = 's32[1]{0}', space=sflag, size = 0x4, scoped, tag = 'scoped memory for tpu_custom_call.1']
    #allocation5 [shape = 'u8[262144]{0}', space=vmem, size = 0x40000, scoped, tag = 'output window, operand 0, single buffered']
    %6 = vsyncpa [#allocation3], 0
    %7 = vsyncpa [#allocation4], 0
    // Predicated region
    $region2: #{tpu_custom_call.1} parent=1 // pred_check
      _
    $region3: #{tpu_custom_call.1} parent=1 // pred_check_branch
      %9 = sbr.rel (0) target = $region5
    $region4: #{tpu_custom_call.1} parent=1 // pred_region
      %s11 = ssub.s32 2048, 2048
      %12 = vsyncadd [#allocation3], %s11
      %s13 = sshll.u32 [#allocation2], 4
      %s14 = int_to_ptr.vmem [resolvable:$true] %s13
      %19 = dma.hbm_to_vmem [thread:$0]  %s0, 2048, %s14, [#allocation3], 128, 128, 8
    $region5: #{tpu_custom_call.1} parent=1 // pred_fallthru
      _
    // Predicated region
    $region6: #{tpu_custom_call.1} parent=1 // pred_check
      _
    $region7: #{tpu_custom_call.1} parent=1 // pred_check_branch
      %21 = sbr.rel (0) target = $region9
    $region8: #{tpu_custom_call.1} parent=1 // pred_region
      %22 = dma.done [#allocation3], 2048
    $region9: #{tpu_custom_call.1} parent=1 // pred_fallthru
      _
    %v23 = vld [vmem:[#allocation2] sm:$0xff]
    %v24 = vld [vmem:[#allocation2 + $0x8] sm:$0xff]
    %v25 = vld [vmem:[#allocation2 + $0x10] sm:$0xff]
    %v26 = vld [vmem:[#allocation2 + $0x18] sm:$0xff]
    %v27 = vld [vmem:[#allocation2 + $0x20] sm:$0xff]
    %v28 = vld [vmem:[#allocation2 + $0x28] sm:$0xff]
    %v29 = vld [vmem:[#allocation2 + $0x30] sm:$0xff]
    %v30 = vld [vmem:[#allocation2 + $0x38] sm:$0xff]
    %v31 = vld [vmem:[#allocation2 + $0x40] sm:$0xff]
    %v32 = vld [vmem:[#allocation2 + $0x48] sm:$0xff]
    %v33 = vld [vmem:[#allocation2 + $0x50] sm:$0xff]
    %v34 = vld [vmem:[#allocation2 + $0x58] sm:$0xff]
    %v35 = vld [vmem:[#allocation2 + $0x60] sm:$0xff]
    %v36 = vld [vmem:[#allocation2 + $0x68] sm:$0xff]
    %v37 = vld [vmem:[#allocation2 + $0x70] sm:$0xff]
    %v38 = vld [vmem:[#allocation2 + $0x78] sm:$0xff]
    %vm39 = vcmask 130048
    %40 = vst.msk [vmem:[#allocation5] sm:$0xff] %vm39, %v23
    %41 = vst.msk [vmem:[#allocation5 + $0x8] sm:$0xff] %vm39, %v24
    %42 = vst.msk [vmem:[#allocation5 + $0x20] sm:$0xff] %vm39, %v25
    %43 = vst.msk [vmem:[#allocation5 + $0x28] sm:$0xff] %vm39, %v26
    %44 = vst.msk [vmem:[#allocation5 + $0x40] sm:$0xff] %vm39, %v27
    %45 = vst.msk [vmem:[#allocation5 + $0x48] sm:$0xff] %vm39, %v28
    %46 = vst.msk [vmem:[#allocation5 + $0x60] sm:$0xff] %vm39, %v29
    %47 = vst.msk [vmem:[#allocation5 + $0x68] sm:$0xff] %vm39, %v30
    %48 = vst.msk [vmem:[#allocation5 + $0x80] sm:$0xff] %vm39, %v31
    %49 = vst.msk [vmem:[#allocation5 + $0x88] sm:$0xff] %vm39, %v32
    %50 = vst.msk [vmem:[#allocation5 + $0xa0] sm:$0xff] %vm39, %v33
    %51 = vst.msk [vmem:[#allocation5 + $0xa8] sm:$0xff] %vm39, %v34
    %52 = vst.msk [vmem:[#allocation5 + $0xc0] sm:$0xff] %vm39, %v35
    %53 = vst.msk [vmem:[#allocation5 + $0xc8] sm:$0xff] %vm39, %v36
    %54 = vst.msk [vmem:[#allocation5 + $0xe0] sm:$0xff] %vm39, %v37
    %55 = vst.msk [vmem:[#allocation5 + $0xe8] sm:$0xff] %vm39, %v38
    %v56 = vld [vmem:[#allocation2] sm:$0xff]
    %v57 = vld [vmem:[#allocation2 + $0x8] sm:$0xff]
    %v58 = vld [vmem:[#allocation2 + $0x10] sm:$0xff]
    %v59 = vld [vmem:[#allocation2 + $0x18] sm:$0xff]
    %v60 = vld [vmem:[#allocation2 + $0x20] sm:$0xff]
    %v61 = vld [vmem:[#allocation2 + $0x28] sm:$0xff]
    %v62 = vld [vmem:[#allocation2 + $0x30] sm:$0xff]
    %v63 = vld [vmem:[#allocation2 + $0x38] sm:$0xff]
    %v64 = vld [vmem:[#allocation2 + $0x40] sm:$0xff]
    %v65 = vld [vmem:[#allocation2 + $0x48] sm:$0xff]
    %v66 = vld [vmem:[#allocation2 + $0x50] sm:$0xff]
    %v67 = vld [vmem:[#allocation2 + $0x58] sm:$0xff]
    %v68 = vld [vmem:[#allocation2 + $0x60] sm:$0xff]
    %v69 = vld [vmem:[#allocation2 + $0x68] sm:$0xff]
    %v70 = vld [vmem:[#allocation2 + $0x70] sm:$0xff]
    %v71 = vld [vmem:[#allocation2 + $0x78] sm:$0xff]
    %88 = vrot.lane.b32.xlu0 %v56, 16
    %v89 = vpop.permute.xlu0 %88
    %90 = vrot.lane.b32.xlu0 %v57, 16
    %v91 = vpop.permute.xlu0 %90
    %92 = vrot.lane.b32.xlu0 %v58, 16
    %v93 = vpop.permute.xlu0 %92
    %94 = vrot.lane.b32.xlu0 %v59, 16
    %v95 = vpop.permute.xlu0 %94
    %96 = vrot.lane.b32.xlu0 %v60, 16
    %v97 = vpop.permute.xlu0 %96
    %98 = vrot.lane.b32.xlu0 %v61, 16
    %v99 = vpop.permute.xlu0 %98
    %100 = vrot.lane.b32.xlu0 %v62, 16
    %v101 = vpop.permute.xlu0 %100
    %102 = vrot.lane.b32.xlu0 %v63, 16
    %v103 = vpop.permute.xlu0 %102
    %104 = vrot.lane.b32.xlu0 %v64, 16
    %v105 = vpop.permute.xlu0 %104
    %106 = vrot.lane.b32.xlu0 %v65, 16
    %v107 = vpop.permute.xlu0 %106
    %108 = vrot.lane.b32.xlu0 %v66, 16
    %v109 = vpop.permute.xlu0 %108
    %110 = vrot.lane.b32.xlu0 %v67, 16
    %v111 = vpop.permute.xlu0 %110
    %112 = vrot.lane.b32.xlu0 %v68, 16
    %v113 = vpop.permute.xlu0 %112
    %114 = vrot.lane.b32.xlu0 %v69, 16
    %v115 = vpop.permute.xlu0 %114
    %116 = vrot.lane.b32.xlu0 %v70, 16
    %v117 = vpop.permute.xlu0 %116
    %118 = vrot.lane.b32.xlu0 %v71, 16
    %v119 = vpop.permute.xlu0 %118
    %vm136 = vcmask 261248
    %137 = vst.msk [vmem:[#allocation5] sm:$0xff] %vm136, %v89
    %138 = vst.msk [vmem:[#allocation5 + $0x8] sm:$0xff] %vm136, %v91
    %139 = vst.msk [vmem:[#allocation5 + $0x20] sm:$0xff] %vm136, %v93
    %140 = vst.msk [vmem:[#allocation5 + $0x28] sm:$0xff] %vm136, %v95
    %141 = vst.msk [vmem:[#allocation5 + $0x40] sm:$0xff] %vm136, %v97
    %142 = vst.msk [vmem:[#allocation5 + $0x48] sm:$0xff] %vm136, %v99
    %143 = vst.msk [vmem:[#allocation5 + $0x60] sm:$0xff] %vm136, %v101
    %144 = vst.msk [vmem:[#allocation5 + $0x68] sm:$0xff] %vm136, %v103
    %145 = vst.msk [vmem:[#allocation5 + $0x80] sm:$0xff] %vm136, %v105
    %146 = vst.msk [vmem:[#allocation5 + $0x88] sm:$0xff] %vm136, %v107
    %147 = vst.msk [vmem:[#allocation5 + $0xa0] sm:$0xff] %vm136, %v109
    %148 = vst.msk [vmem:[#allocation5 + $0xa8] sm:$0xff] %vm136, %v111
    %149 = vst.msk [vmem:[#allocation5 + $0xc0] sm:$0xff] %vm136, %v113
    %150 = vst.msk [vmem:[#allocation5 + $0xc8] sm:$0xff] %vm136, %v115
    %151 = vst.msk [vmem:[#allocation5 + $0xe0] sm:$0xff] %vm136, %v117
    %152 = vst.msk [vmem:[#allocation5 + $0xe8] sm:$0xff] %vm136, %v119
    %v153 = vld [vmem:[#allocation2] sm:$0xff]
    %v154 = vld [vmem:[#allocation2 + $0x8] sm:$0xff]
    %v155 = vld [vmem:[#allocation2 + $0x10] sm:$0xff]
    %v156 = vld [vmem:[#allocation2 + $0x18] sm:$0xff]
    %v157 = vld [vmem:[#allocation2 + $0x20] sm:$0xff]
    %v158 = vld [vmem:[#allocation2 + $0x28] sm:$0xff]
    %v159 = vld [vmem:[#allocation2 + $0x30] sm:$0xff]
    %v160 = vld [vmem:[#allocation2 + $0x38] sm:$0xff]
    %v161 = vld [vmem:[#allocation2 + $0x40] sm:$0xff]
    %v162 = vld [vmem:[#allocation2 + $0x48] sm:$0xff]
    %v163 = vld [vmem:[#allocation2 + $0x50] sm:$0xff]
    %v164 = vld [vmem:[#allocation2 + $0x58] sm:$0xff]
    %v165 = vld [vmem:[#allocation2 + $0x60] sm:$0xff]
    %v166 = vld [vmem:[#allocation2 + $0x68] sm:$0xff]
    %v167 = vld [vmem:[#allocation2 + $0x70] sm:$0xff]
    %v168 = vld [vmem:[#allocation2 + $0x78] sm:$0xff]
    %169 = vst.msk [vmem:[#allocation5 + $0x10] sm:$0xff] %vm39, %v153
    %170 = vst.msk [vmem:[#allocation5 + $0x18] sm:$0xff] %vm39, %v154
    %171 = vst.msk [vmem:[#allocation5 + $0x30] sm:$0xff] %vm39, %v155
    %172 = vst.msk [vmem:[#allocation5 + $0x38] sm:$0xff] %vm39, %v156
    %173 = vst.msk [vmem:[#allocation5 + $0x50] sm:$0xff] %vm39, %v157
    %174 = vst.msk [vmem:[#allocation5 + $0x58] sm:$0xff] %vm39, %v158
    %175 = vst.msk [vmem:[#allocation5 + $0x70] sm:$0xff] %vm39, %v159
    %176 = vst.msk [vmem:[#allocation5 + $0x78] sm:$0xff] %vm39, %v160
    %177 = vst.msk [vmem:[#allocation5 + $0x90] sm:$0xff] %vm39, %v161
    %178 = vst.msk [vmem:[#allocation5 + $0x98] sm:$0xff] %vm39, %v162
    %179 = vst.msk [vmem:[#allocation5 + $0xb0] sm:$0xff] %vm39, %v163
    %180 = vst.msk [vmem:[#allocation5 + $0xb8] sm:$0xff] %vm39, %v164
    %181 = vst.msk [vmem:[#allocation5 + $0xd0] sm:$0xff] %vm39, %v165
    %182 = vst.msk [vmem:[#allocation5 + $0xd8] sm:$0xff] %vm39, %v166
    %183 = vst.msk [vmem:[#allocation5 + $0xf0] sm:$0xff] %vm39, %v167
    %184 = vst.msk [vmem:[#allocation5 + $0xf8] sm:$0xff] %vm39, %v168
    %v185 = vld [vmem:[#allocation2] sm:$0xff]
    %v186 = vld [vmem:[#allocation2 + $0x8] sm:$0xff]
    %v187 = vld [vmem:[#allocation2 + $0x10] sm:$0xff]
    %v188 = vld [vmem:[#allocation2 + $0x18] sm:$0xff]
    %v189 = vld [vmem:[#allocation2 + $0x20] sm:$0xff]
    %v190 = vld [vmem:[#allocation2 + $0x28] sm:$0xff]
    %v191 = vld [vmem:[#allocation2 + $0x30] sm:$0xff]
    %v192 = vld [vmem:[#allocation2 + $0x38] sm:$0xff]
    %v193 = vld [vmem:[#allocation2 + $0x40] sm:$0xff]
    %v194 = vld [vmem:[#allocation2 + $0x48] sm:$0xff]
    %v195 = vld [vmem:[#allocation2 + $0x50] sm:$0xff]
    %v196 = vld [vmem:[#allocation2 + $0x58] sm:$0xff]
    %v197 = vld [vmem:[#allocation2 + $0x60] sm:$0xff]
    %v198 = vld [vmem:[#allocation2 + $0x68] sm:$0xff]
    %v199 = vld [vmem:[#allocation2 + $0x70] sm:$0xff]
    %v200 = vld [vmem:[#allocation2 + $0x78] sm:$0xff]
    %217 = vrot.lane.b32.xlu0 %v185, 16
    %v218 = vpop.permute.xlu0 %217
    %219 = vrot.lane.b32.xlu0 %v186, 16
    %v220 = vpop.permute.xlu0 %219
    %221 = vrot.lane.b32.xlu0 %v187, 16
    %v222 = vpop.permute.xlu0 %221
    %223 = vrot.lane.b32.xlu0 %v188, 16
    %v224 = vpop.permute.xlu0 %223
    %225 = vrot.lane.b32.xlu0 %v189, 16
    %v226 = vpop.permute.xlu0 %225
    %227 = vrot.lane.b32.xlu0 %v190, 16
    %v228 = vpop.permute.xlu0 %227
    %229 = vrot.lane.b32.xlu0 %v191, 16
    %v230 = vpop.permute.xlu0 %229
    %231 = vrot.lane.b32.xlu0 %v192, 16
    %v232 = vpop.permute.xlu0 %231
    %233 = vrot.lane.b32.xlu0 %v193, 16
    %v234 = vpop.permute.xlu0 %233
    %235 = vrot.lane.b32.xlu0 %v194, 16
    %v236 = vpop.permute.xlu0 %235
    %237 = vrot.lane.b32.xlu0 %v195, 16
    %v238 = vpop.permute.xlu0 %237
    %239 = vrot.lane.b32.xlu0 %v196, 16
    %v240 = vpop.permute.xlu0 %239
    %241 = vrot.lane.b32.xlu0 %v197, 16
    %v242 = vpop.permute.xlu0 %241
    %243 = vrot.lane.b32.xlu0 %v198, 16
    %v244 = vpop.permute.xlu0 %243
    %245 = vrot.lane.b32.xlu0 %v199, 16
    %v246 = vpop.permute.xlu0 %245
    %247 = vrot.lane.b32.xlu0 %v200, 16
    %v248 = vpop.permute.xlu0 %247
    %265 = vst.msk [vmem:[#allocation5 + $0x10] sm:$0xff] %vm136, %v218
    %266 = vst.msk [vmem:[#allocation5 + $0x18] sm:$0xff] %vm136, %v220
    %267 = vst.msk [vmem:[#allocation5 + $0x30] sm:$0xff] %vm136, %v222
    %268 = vst.msk [vmem:[#allocation5 + $0x38] sm:$0xff] %vm136, %v224
    %269 = vst.msk [vmem:[#allocation5 + $0x50] sm:$0xff] %vm136, %v226
    %270 = vst.msk [vmem:[#allocation5 + $0x58] sm:$0xff] %vm136, %v228
    %271 = vst.msk [vmem:[#allocation5 + $0x70] sm:$0xff] %vm136, %v230
    %272 = vst.msk [vmem:[#allocation5 + $0x78] sm:$0xff] %vm136, %v232
    %273 = vst.msk [vmem:[#allocation5 + $0x90] sm:$0xff] %vm136, %v234
    %274 = vst.msk [vmem:[#allocation5 + $0x98] sm:$0xff] %vm136, %v236
    %275 = vst.msk [vmem:[#allocation5 + $0xb0] sm:$0xff] %vm136, %v238
    %276 = vst.msk [vmem:[#allocation5 + $0xb8] sm:$0xff] %vm136, %v240
    %277 = vst.msk [vmem:[#allocation5 + $0xd0] sm:$0xff] %vm136, %v242
    %278 = vst.msk [vmem:[#allocation5 + $0xd8] sm:$0xff] %vm136, %v244
    %279 = vst.msk [vmem:[#allocation5 + $0xf0] sm:$0xff] %vm136, %v246
    %280 = vst.msk [vmem:[#allocation5 + $0xf8] sm:$0xff] %vm136, %v248
    %v281 = vld [vmem:[#allocation2] sm:$0xff]
    %v282 = vld [vmem:[#allocation2 + $0x8] sm:$0xff]
    %v283 = vld [vmem:[#allocation2 + $0x10] sm:$0xff]
    %v284 = vld [vmem:[#allocation2 + $0x18] sm:$0xff]
    %v285 = vld [vmem:[#allocation2 + $0x20] sm:$0xff]
    %v286 = vld [vmem:[#allocation2 + $0x28] sm:$0xff]
    %v287 = vld [vmem:[#allocation2 + $0x30] sm:$0xff]
    %v288 = vld [vmem:[#allocation2 + $0x38] sm:$0xff]
    %v289 = vld [vmem:[#allocation2 + $0x40] sm:$0xff]
    %v290 = vld [vmem:[#allocation2 + $0x48] sm:$0xff]
    %v291 = vld [vmem:[#allocation2 + $0x50] sm:$0xff]
    %v292 = vld [vmem:[#allocation2 + $0x58] sm:$0xff]
    %v293 = vld [vmem:[#allocation2 + $0x60] sm:$0xff]
    %v294 = vld [vmem:[#allocation2 + $0x68] sm:$0xff]
    %v295 = vld [vmem:[#allocation2 + $0x70] sm:$0xff]
    %v296 = vld [vmem:[#allocation2 + $0x78] sm:$0xff]
    %s297 = scalar_lea.vmem [#allocation5], 256
    %298 = vst.msk [vmem:[%s297] sm:$0xff] %vm39, %v281
    %299 = vst.msk [vmem:[%s297 + $0x8] sm:$0xff] %vm39, %v282
    %300 = vst.msk [vmem:[%s297 + $0x20] sm:$0xff] %vm39, %v283
    %301 = vst.msk [vmem:[%s297 + $0x28] sm:$0xff] %vm39, %v284
    %302 = vst.msk [vmem:[%s297 + $0x40] sm:$0xff] %vm39, %v285
    %303 = vst.msk [vmem:[%s297 + $0x48] sm:$0xff] %vm39, %v286
    %304 = vst.msk [vmem:[%s297 + $0x60] sm:$0xff] %vm39, %v287
    %305 = vst.msk [vmem:[%s297 + $0x68] sm:$0xff] %vm39, %v288
    %306 = vst.msk [vmem:[%s297 + $0x80] sm:$0xff] %vm39, %v289
    %307 = vst.msk [vmem:[%s297 + $0x88] sm:$0xff] %vm39, %v290
    %308 = vst.msk [vmem:[%s297 + $0xa0] sm:$0xff] %vm39, %v291
    %309 = vst.msk [vmem:[%s297 + $0xa8] sm:$0xff] %vm39, %v292
    %310 = vst.msk [vmem:[%s297 + $0xc0] sm:$0xff] %vm39, %v293
    %311 = vst.msk [vmem:[%s297 + $0xc8] sm:$0xff] %vm39, %v294
    %312 = vst.msk [vmem:[%s297 + $0xe0] sm:$0xff] %vm39, %v295
    %313 = vst.msk [vmem:[%s297 + $0xe8] sm:$0xff] %vm39, %v296
    %v314 = vld [vmem:[#allocation2] sm:$0xff]
    %v315 = vld [vmem:[#allocation2 + $0x8] sm:$0xff]
    %v316 = vld [vmem:[#allocation2 + $0x10] sm:$0xff]
    %v317 = vld [vmem:[#allocation2 + $0x18] sm:$0xff]
    %v318 = vld [vmem:[#allocation2 + $0x20] sm:$0xff]
    %v319 = vld [vmem:[#allocation2 + $0x28] sm:$0xff]
    %v320 = vld [vmem:[#allocation2 + $0x30] sm:$0xff]
    %v321 = vld [vmem:[#allocation2 + $0x38] sm:$0xff]
    %v322 = vld [vmem:[#allocation2 + $0x40] sm:$0xff]
    %v323 = vld [vmem:[#allocation2 + $0x48] sm:$0xff]
    %v324 = vld [vmem:[#allocation2 + $0x50] sm:$0xff]
    %v325 = vld [vmem:[#allocation2 + $0x58] sm:$0xff]
    %v326 = vld [vmem:[#allocation2 + $0x60] sm:$0xff]
    %v327 = vld [vmem:[#allocation2 + $0x68] sm:$0xff]
    %v328 = vld [vmem:[#allocation2 + $0x70] sm:$0xff]
    %v329 = vld [vmem:[#allocation2 + $0x78] sm:$0xff]
    %346 = vrot.lane.b32.xlu0 %v314, 16
    %v347 = vpop.permute.xlu0 %346
    %348 = vrot.lane.b32.xlu0 %v315, 16
    %v349 = vpop.permute.xlu0 %348
    %350 = vrot.lane.b32.xlu0 %v316, 16
    %v351 = vpop.permute.xlu0 %350
    %352 = vrot.lane.b32.xlu0 %v317, 16
    %v353 = vpop.permute.xlu0 %352
    %354 = vrot.lane.b32.xlu0 %v318, 16
    %v355 = vpop.permute.xlu0 %354
    %356 = vrot.lane.b32.xlu0 %v319, 16
    %v357 = vpop.permute.xlu0 %356
    %358 = vrot.lane.b32.xlu0 %v320, 16
    %v359 = vpop.permute.xlu0 %358
    %360 = vrot.lane.b32.xlu0 %v321, 16
    %v361 = vpop.permute.xlu0 %360
    %362 = vrot.lane.b32.xlu0 %v322, 16
    %v363 = vpop.permute.xlu0 %362
    %364 = vrot.lane.b32.xlu0 %v323, 16
    %v365 = vpop.permute.xlu0 %364
    %366 = vrot.lane.b32.xlu0 %v324, 16
    %v367 = vpop.permute.xlu0 %366
    %368 = vrot.lane.b32.xlu0 %v325, 16
    %v369 = vpop.permute.xlu0 %368
    %370 = vrot.lane.b32.xlu0 %v326, 16
    %v371 = vpop.permute.xlu0 %370
    %372 = vrot.lane.b32.xlu0 %v327, 16
    %v373 = vpop.permute.xlu0 %372
    %374 = vrot.lane.b32.xlu0 %v328, 16
    %v375 = vpop.permute.xlu0 %374
    %376 = vrot.lane.b32.xlu0 %v329, 16
    %v377 = vpop.permute.xlu0 %376
    %394 = vst.msk [vmem:[%s297] sm:$0xff] %vm136, %v347
    %395 = vst.msk [vmem:[%s297 + $0x8] sm:$0xff] %vm136, %v349
    %396 = vst.msk [vmem:[%s297 + $0x20] sm:$0xff] %vm136, %v351
    %397 = vst.msk [vmem:[%s297 + $0x28] sm:$0xff] %vm136, %v353
    %398 = vst.msk [vmem:[%s297 + $0x40] sm:$0xff] %vm136, %v355
    %399 = vst.msk [vmem:[%s297 + $0x48] sm:$0xff] %vm136, %v357
    %400 = vst.msk [vmem:[%s297 + $0x60] sm:$0xff] %vm136, %v359
    %401 = vst.msk [vmem:[%s297 + $0x68] sm:$0xff] %vm136, %v361
    %402 = vst.msk [vmem:[%s297 + $0x80] sm:$0xff] %vm136, %v363
    %403 = vst.msk [vmem:[%s297 + $0x88] sm:$0xff] %vm136, %v365
    %404 = vst.msk [vmem:[%s297 + $0xa0] sm:$0xff] %vm136, %v367
    %405 = vst.msk [vmem:[%s297 + $0xa8] sm:$0xff] %vm136, %v369
    %406 = vst.msk [vmem:[%s297 + $0xc0] sm:$0xff] %vm136, %v371
    %407 = vst.msk [vmem:[%s297 + $0xc8] sm:$0xff] %vm136, %v373
    %408 = vst.msk [vmem:[%s297 + $0xe0] sm:$0xff] %vm136, %v375
    %409 = vst.msk [vmem:[%s297 + $0xe8] sm:$0xff] %vm136, %v377
    %v410 = vld [vmem:[#allocation2] sm:$0xff]
    %v411 = vld [vmem:[#allocation2 + $0x8] sm:$0xff]
    %v412 = vld [vmem:[#allocation2 + $0x10] sm:$0xff]
    %v413 = vld [vmem:[#allocation2 + $0x18] sm:$0xff]
    %v414 = vld [vmem:[#allocation2 + $0x20] sm:$0xff]
    %v415 = vld [vmem:[#allocation2 + $0x28] sm:$0xff]
    %v416 = vld [vmem:[#allocation2 + $0x30] sm:$0xff]
    %v417 = vld [vmem:[#allocation2 + $0x38] sm:$0xff]
    %v418 = vld [vmem:[#allocation2 + $0x40] sm:$0xff]
    %v419 = vld [vmem:[#allocation2 + $0x48] sm:$0xff]
    %v420 = vld [vmem:[#allocation2 + $0x50] sm:$0xff]
    %v421 = vld [vmem:[#allocation2 + $0x58] sm:$0xff]
    %v422 = vld [vmem:[#allocation2 + $0x60] sm:$0xff]
    %v423 = vld [vmem:[#allocation2 + $0x68] sm:$0xff]
    %v424 = vld [vmem:[#allocation2 + $0x70] sm:$0xff]
    %v425 = vld [vmem:[#allocation2 + $0x78] sm:$0xff]
    %426 = vst.msk [vmem:[%s297 + $0x10] sm:$0xff] %vm39, %v410
    %427 = vst.msk [vmem:[%s297 + $0x18] sm:$0xff] %vm39, %v411
    %428 = vst.msk [vmem:[%s297 + $0x30] sm:$0xff] %vm39, %v412
    %429 = vst.msk [vmem:[%s297 + $0x38] sm:$0xff] %vm39, %v413
    %430 = vst.msk [vmem:[%s297 + $0x50] sm:$0xff] %vm39, %v414
    %431 = vst.msk [vmem:[%s297 + $0x58] sm:$0xff] %vm39, %v415
    %432 = vst.msk [vmem:[%s297 + $0x70] sm:$0xff] %vm39, %v416
    %433 = vst.msk [vmem:[%s297 + $0x78] sm:$0xff] %vm39, %v417
    %434 = vst.msk [vmem:[%s297 + $0x90] sm:$0xff] %vm39, %v418
    %435 = vst.msk [vmem:[%s297 + $0x98] sm:$0xff] %vm39, %v419
    %436 = vst.msk [vmem:[%s297 + $0xb0] sm:$0xff] %vm39, %v420
    %437 = vst.msk [vmem:[%s297 + $0xb8] sm:$0xff] %vm39, %v421
    %438 = vst.msk [vmem:[%s297 + $0xd0] sm:$0xff] %vm39, %v422
    %439 = vst.msk [vmem:[%s297 + $0xd8] sm:$0xff] %vm39, %v423
    %440 = vst.msk [vmem:[%s297 + $0xf0] sm:$0xff] %vm39, %v424
    %441 = vst.msk [vmem:[%s297 + $0xf8] sm:$0xff] %vm39, %v425
    %v442 = vld [vmem:[#allocation2] sm:$0xff]
    %v443 = vld [vmem:[#allocation2 + $0x8] sm:$0xff]
    %v444 = vld [vmem:[#allocation2 + $0x10] sm:$0xff]
    %v445 = vld [vmem:[#allocation2 + $0x18] sm:$0xff]
    %v446 = vld [vmem:[#allocation2 + $0x20] sm:$0xff]
    %v447 = vld [vmem:[#allocation2 + $0x28] sm:$0xff]
    %v448 = vld [vmem:[#allocation2 + $0x30] sm:$0xff]
    %v449 = vld [vmem:[#allocation2 + $0x38] sm:$0xff]
    %v450 = vld [vmem:[#allocation2 + $0x40] sm:$0xff]
    %v451 = vld [vmem:[#allocation2 + $0x48] sm:$0xff]
    %v452 = vld [vmem:[#allocation2 + $0x50] sm:$0xff]
    %v453 = vld [vmem:[#allocation2 + $0x58] sm:$0xff]
    %v454 = vld [vmem:[#allocation2 + $0x60] sm:$0xff]
    %v455 = vld [vmem:[#allocation2 + $0x68] sm:$0xff]
    %v456 = vld [vmem:[#allocation2 + $0x70] sm:$0xff]
    %v457 = vld [vmem:[#allocation2 + $0x78] sm:$0xff]
    %474 = vrot.lane.b32.xlu0 %v442, 16
    %v475 = vpop.permute.xlu0 %474
    %476 = vrot.lane.b32.xlu0 %v443, 16
    %v477 = vpop.permute.xlu0 %476
    %478 = vrot.lane.b32.xlu0 %v444, 16
    %v479 = vpop.permute.xlu0 %478
    %480 = vrot.lane.b32.xlu0 %v445, 16
    %v481 = vpop.permute.xlu0 %480
    %482 = vrot.lane.b32.xlu0 %v446, 16
    %v483 = vpop.permute.xlu0 %482
    %484 = vrot.lane.b32.xlu0 %v447, 16
    %v485 = vpop.permute.xlu0 %484
    %486 = vrot.lane.b32.xlu0 %v448, 16
    %v487 = vpop.permute.xlu0 %486
    %488 = vrot.lane.b32.xlu0 %v449, 16
    %v489 = vpop.permute.xlu0 %488
    %490 = vrot.lane.b32.xlu0 %v450, 16
    %v491 = vpop.permute.xlu0 %490
    %492 = vrot.lane.b32.xlu0 %v451, 16
    %v493 = vpop.permute.xlu0 %492
    %494 = vrot.lane.b32.xlu0 %v452, 16
    %v495 = vpop.permute.xlu0 %494
    %496 = vrot.lane.b32.xlu0 %v453, 16
    %v497 = vpop.permute.xlu0 %496
    %498 = vrot.lane.b32.xlu0 %v454, 16
    %v499 = vpop.permute.xlu0 %498
    %500 = vrot.lane.b32.xlu0 %v455, 16
    %v501 = vpop.permute.xlu0 %500
    %502 = vrot.lane.b32.xlu0 %v456, 16
    %v503 = vpop.permute.xlu0 %502
    %504 = vrot.lane.b32.xlu0 %v457, 16
    %v505 = vpop.permute.xlu0 %504
    %522 = vst.msk [vmem:[%s297 + $0x10] sm:$0xff] %vm136, %v475
    %523 = vst.msk [vmem:[%s297 + $0x18] sm:$0xff] %vm136, %v477
    %524 = vst.msk [vmem:[%s297 + $0x30] sm:$0xff] %vm136, %v479
    %525 = vst.msk [vmem:[%s297 + $0x38] sm:$0xff] %vm136, %v481
    %526 = vst.msk [vmem:[%s297 + $0x50] sm:$0xff] %vm136, %v483
    %527 = vst.msk [vmem:[%s297 + $0x58] sm:$0xff] %vm136, %v485
    %528 = vst.msk [vmem:[%s297 + $0x70] sm:$0xff] %vm136, %v487
    %529 = vst.msk [vmem:[%s297 + $0x78] sm:$0xff] %vm136, %v489
    %530 = vst.msk [vmem:[%s297 + $0x90] sm:$0xff] %vm136, %v491
    %531 = vst.msk [vmem:[%s297 + $0x98] sm:$0xff] %vm136, %v493
    %532 = vst.msk [vmem:[%s297 + $0xb0] sm:$0xff] %vm136, %v495
    %533 = vst.msk [vmem:[%s297 + $0xb8] sm:$0xff] %vm136, %v497
    %534 = vst.msk [vmem:[%s297 + $0xd0] sm:$0xff] %vm136, %v499
    %535 = vst.msk [vmem:[%s297 + $0xd8] sm:$0xff] %vm136, %v501
    %536 = vst.msk [vmem:[%s297 + $0xf0] sm:$0xff] %vm136, %v503
    %537 = vst.msk [vmem:[%s297 + $0xf8] sm:$0xff] %vm136, %v505
    // Predicated region
    $region10: #{tpu_custom_call.1} parent=1 // pred_check
      _
    $region11: #{tpu_custom_call.1} parent=1 // pred_check_branch
      %539 = sbr.rel (0) target = $region13
    $region12: #{tpu_custom_call.1} parent=1 // pred_region
      %s541 = ssub.s32 8192, 8192
      %542 = vsyncadd [#allocation4], %s541
      %s543 = sshll.u32 [#allocation5], 4
      %s544 = int_to_ptr.vmem [resolvable:$true] %s543
      %549 = dma.vmem_to_hbm [thread:$0]  %s544, 8192, %s1, [#allocation4], 128, 128, 8
    $region13: #{tpu_custom_call.1} parent=1 // pred_fallthru
      _
    // Predicated region
    $region14: #{tpu_custom_call.1} parent=1 // pred_check
      _
    $region15: #{tpu_custom_call.1} parent=1 // pred_check_branch
      %551 = sbr.rel (0) target = $region17
    $region16: #{tpu_custom_call.1} parent=1 // pred_region
      %552 = dma.done [#allocation4], 8192
    $region17: #{tpu_custom_call.1} parent=1 // pred_fallthru
      _
    %553 = vsyncpa [#allocation3], 1
    %554 = vsyncpa [#allocation4], 1

</llo_original>
